<compile_context>
chip_gen: v5e
topology: v5e:2x2
jax: 0.10.0
libtpu: 0.0.40
codegen_flags: <defaults>
</compile_context>

<pallas_src>
import math

import jax
import jax.numpy as jnp
from jax import lax
from jax.experimental import pallas as pl
from jax.experimental.pallas import tpu as pltpu


# ---------------------------------------------------------------------------
# VMEM limit derived per generation (~48 MiB on v7x, ~96 MiB on v5e/v6e).
# ---------------------------------------------------------------------------
def _vmem_limit_bytes():
    try:
        phys = pltpu.get_tpu_info().vmem_capacity_bytes
    except Exception:
        phys = 64 * 1024 * 1024  # conservative (v7x per-TC physical VMEM)
    return min(int(phys) * 3 // 4, 100 * 1024 * 1024)


def _pick_tile(dim, target, align):
    """Largest legal block size <= target along an axis of length `dim`.

    Legal sizes (Pallas (8,128) rule): multiples of `align` that divide `dim`
    exactly, or the full dim.  Never silently returns a block larger than
    `target` unless no aligned divisor exists at all.
    """
    if dim <= target:
        return dim
    best = 0
    t = align
    while t <= target:
        if dim % t == 0:
            best = t
        t += align
    return best if best > 0 else dim


# ---------------------------------------------------------------------------
# 1) Linear projection kernels:  (M, K) @ (K, N) -> (M, N), bf16 in / bf16 out
# ---------------------------------------------------------------------------
def _matmul_resident_kernel(x_ref, w_ref, o_ref):
    # Weight block is VMEM-resident (constant index_map); one full matmul/step.
    o_ref[...] = jnp.dot(
        x_ref[...], w_ref[...], preferred_element_type=jnp.float32
    ).astype(o_ref.dtype)


def _matmul_ktiled_kernel(x_ref, w_ref, o_ref, acc_ref):
    @pl.when(pl.program_id(2) == 0)
    def _():
        acc_ref[...] = jnp.zeros_like(acc_ref)

    acc_ref[...] += jnp.dot(
        x_ref[...], w_ref[...], preferred_element_type=jnp.float32
    )

    # Cast + store only on the last K step (saves (Kt-1)/Kt of vst + cast work).
    @pl.when(pl.program_id(2) == pl.num_programs(2) - 1)
    def _():
        o_ref[...] = acc_ref[...].astype(o_ref.dtype)


def linear_projection(x2d, w, *, tm_target=512, tn_target=512, tk_target=512):
    """x2d: (M, K) bf16, w: (K, N) bf16 -> (M, N) bf16."""
    M, K = x2d.shape
    K2, N = w.shape
    assert K == K2
    vmem_limit = _vmem_limit_bytes()
    tm = _pick_tile(M, tm_target, 8)
    w_bytes = K * N * 2  # bf16

    if w_bytes <= 8 * 1024 * 1024:
        # Path A: weight fully VMEM-resident, activations stream once.
        return pl.pallas_call(
            _matmul_resident_kernel,
            out_shape=jax.ShapeDtypeStruct((M, N), jnp.bfloat16),
            grid_spec=pltpu.PrefetchScalarGridSpec(
                num_scalar_prefetch=0,
                grid=(M // tm,),
                in_specs=[
                    pl.BlockSpec((tm, K), lambda i: (i, 0)),
                    pl.BlockSpec((K, N), lambda i: (0, 0)),  # resident
                ],
                out_specs=pl.BlockSpec((tm, N), lambda i: (i, 0)),
            ),
            compiler_params=pltpu.CompilerParams(
                dimension_semantics=("parallel",),
                vmem_limit_bytes=vmem_limit,
            ),
        )(x2d, w)

    # Path B: large weight -> (M, N, K) tiling, K innermost/"arbitrary".
    tn = _pick_tile(N, tn_target, 128)
    tk = _pick_tile(K, tk_target, 128)
    return pl.pallas_call(
        _matmul_ktiled_kernel,
        out_shape=jax.ShapeDtypeStruct((M, N), jnp.bfloat16),
        grid_spec=pltpu.PrefetchScalarGridSpec(
            num_scalar_prefetch=0,
            grid=(M // tm, N // tn, K // tk),
            in_specs=[
                pl.BlockSpec((tm, tk), lambda i, j, k: (i, k)),
                pl.BlockSpec((tk, tn), lambda i, j, k: (k, j)),
            ],
            out_specs=pl.BlockSpec((tm, tn), lambda i, j, k: (i, j)),
            scratch_shapes=[pltpu.VMEM((tm, tn), jnp.float32)],
        ),
        compiler_params=pltpu.CompilerParams(
            dimension_semantics=("parallel", "parallel", "arbitrary"),
            vmem_limit_bytes=vmem_limit,
        ),
    )(x2d, w)


# ---------------------------------------------------------------------------
# 2) Attention (+ fused W_o): grid = (batch, head), head innermost "arbitrary".
#    Per-step blocks are per-head (Sq,dh)/(Skv,dh); the (Sq, H) f32 accumulator
#    holds the fused output projection and is written lane-dense at h==nh-1.
# ---------------------------------------------------------------------------
def _make_attn_kernel(head_dim):
    inv_sqrt_d = 1.0 / math.sqrt(head_dim)

    def kernel(vl_ref, q_ref, k_ref, v_ref, wo_ref, o_ref, acc_ref):
        b = pl.program_id(0)
        h = pl.program_id(1)

        @pl.when(h == 0)
        def _():
            acc_ref[...] = jnp.zeros_like(acc_ref)

        # Fold 1/sqrt(dh) into q (Sq x dh) instead of the (Sq x Skv) scores.
        q = (q_ref[0] * inv_sqrt_d).astype(jnp.bfloat16)  # (Sq, dh)
        k = k_ref[0]                                       # (Skv, dh)
        v = v_ref[0]                                       # (Skv, dh)

        # scores = q @ k^T on the MXU, f32 accumulation.
        scores = lax.dot_general(
            q, k, (((1,), (1,)), ((), ())), preferred_element_type=jnp.float32
        )  # (Sq, Skv) f32

        # Masked softmax in f32 (mask constant -1e6 stays f32, matches torch).
        vl = vl_ref[b]
        kv_idx = lax.broadcasted_iota(jnp.int32, scores.shape, 1)
        scores = jnp.where(kv_idx < vl, scores, jnp.float32(-1.0e6))

        # TODO(synk): for very long Skv, flash-tile the key/value axis with
        # running m/l scratch instead of materializing the full score block.
        m = jnp.max(scores, axis=-1, keepdims=True)
        e = jnp.exp(scores - m)
        denom = jnp.sum(e, axis=-1, keepdims=True)
        p = (e * pl.reciprocal(denom, approx=True)).astype(jnp.bfloat16)

        # Per-head context, then fused output projection:
        #   concat_h(pv_h) @ W_o == sum_h pv_h @ W_o[h*dh:(h+1)*dh, :]
        pv = jnp.dot(p, v, preferred_element_type=jnp.float32)          # (Sq, dh)
        acc_ref[...] += jnp.dot(
            pv.astype(jnp.bfloat16), wo_ref[0], preferred_element_type=jnp.float32
        )                                                               # (Sq, H)

        @pl.when(h == pl.num_programs(1) - 1)
        def _():
            # NOTE: could be bf16 to halve writeback bytes if downstream allows.
            o_ref[0] = acc_ref[...].astype(o_ref.dtype)

    return kernel


def attention_with_output_proj(q, k, v, wo3, valid_lens, num_heads):
    """q,k,v: (B*nh, S, dh) bf16; wo3: (nh, dh, H) bf16; valid_lens: (B,) i32."""
    BH, Sq, dh = q.shape
    _, Skv, _ = k.shape
    B = BH // num_heads
    H = num_heads * dh

    kernel = _make_attn_kernel(dh)

    grid_spec = pltpu.PrefetchScalarGridSpec(
        num_scalar_prefetch=1,
        grid=(B, num_heads),
        in_specs=[
            pl.BlockSpec((1, Sq, dh), lambda b, h, vl: (b * num_heads + h, 0, 0)),
            pl.BlockSpec((1, Skv, dh), lambda b, h, vl: (b * num_heads + h, 0, 0)),
            pl.BlockSpec((1, Skv, dh), lambda b, h, vl: (b * num_heads + h, 0, 0)),
            pl.BlockSpec((1, dh, H), lambda b, h, vl: (h, 0, 0)),
        ],
        out_specs=pl.BlockSpec((1, Sq, H), lambda b, h, vl: (b, 0, 0)),
        scratch_shapes=[pltpu.VMEM((Sq, H), jnp.float32)],
    )
    return pl.pallas_call(
        kernel,
        out_shape=jax.ShapeDtypeStruct((B, Sq, H), jnp.float32),
        grid_spec=grid_spec,
        compiler_params=pltpu.CompilerParams(
            # batch axis parallel (2nd TC on v7x); head axis accumulates -> arbitrary
            dimension_semantics=("parallel", "arbitrary"),
            vmem_limit_bytes=_vmem_limit_bytes(),
        ),
    )(valid_lens, q, k, v, wo3)


# ---------------------------------------------------------------------------
# Glue (plain JAX reshapes/transposes between the pallas_calls)
# ---------------------------------------------------------------------------
def transpose_qkv(x, num_heads):
    B, S, H = x.shape
    dh = H // num_heads
    x = x.reshape(B, S, num_heads, dh).transpose(0, 2, 1, 3)
    return x.reshape(B * num_heads, S, dh)


def transpose_output(x, num_heads):  # only used by the pure-JAX reference
    BH, S, dh = x.shape
    B = BH // num_heads
    x = x.reshape(B, num_heads, S, dh).transpose(0, 2, 1, 3)
    return x.reshape(B, S, num_heads * dh)


def multi_head_attention(queries, keys, values, valid_lens, params, num_heads):
    """queries/keys/values: (B, S, feat) f32; valid_lens: (B,) int or None."""
    B, Sq, Dq = queries.shape
    _, Skv, Dk = keys.shape
    Dv = values.shape[-1]
    H = params["W_q"].shape[1]
    dh = H // num_heads

    qb = queries.astype(jnp.bfloat16)
    kb = keys.astype(jnp.bfloat16)
    vb = values.astype(jnp.bfloat16)

    # Three weight-resident projections (each activation read from HBM once).
    q_proj = linear_projection(
        qb.reshape(B * Sq, Dq), params["W_q"].astype(jnp.bfloat16)
    ).reshape(B, Sq, H)
    k_proj = linear_projection(
        kb.reshape(B * Skv, Dk), params["W_k"].astype(jnp.bfloat16)
    ).reshape(B, Skv, H)
    v_proj = linear_projection(
        vb.reshape(B * Skv, Dv), params["W_v"].astype(jnp.bfloat16)
    ).reshape(B, Skv, H)

    # TODO(synk): the head-split transpose is still a JAX-side bf16 HBM round
    # trip; folding it into a kernel boundary needs dh-wide (<128) lane blocks
    # (masked vst) for dh like 8/64, so it is only worth doing when dh % 128 == 0.
    q = transpose_qkv(q_proj, num_heads)  # (B*nh, Sq, dh) bf16
    k = transpose_qkv(k_proj, num_heads)
    v = transpose_qkv(v_proj, num_heads)

    wo3 = params["W_o"].astype(jnp.bfloat16).reshape(num_heads, dh, H)

    if valid_lens is None:
        vl = jnp.full((B,), Skv, dtype=jnp.int32)  # no masking
    else:
        # TODO(synk): 2-D (per-query) valid_lens is not supported; only (B,).
        assert valid_lens.ndim == 1
        vl = valid_lens.astype(jnp.int32)

    return attention_with_output_proj(q, k, v, wo3, vl, num_heads)


# ---------------------------------------------------------------------------
# Pure-JAX f32 reference (mirrors the PyTorch code) for a correctness check
# ---------------------------------------------------------------------------
def reference_mha(queries, keys, values, valid_lens, params, num_heads):
    q = transpose_qkv(queries @ params["W_q"], num_heads)
    k = transpose_qkv(keys @ params["W_k"], num_heads)
    v = transpose_qkv(values @ params["W_v"], num_heads)
    vl = jnp.repeat(valid_lens, num_heads, axis=0)
    d = q.shape[-1]
    scores = jnp.einsum("bqd,bkd->bqk", q, k) / math.sqrt(d)
    mask = jnp.arange(scores.shape[-1])[None, None, :] < vl[:, None, None]
    scores = jnp.where(mask, scores, -1.0e6)
    attn = jax.nn.softmax(scores, axis=-1)
    out = jnp.einsum("bqk,bkd->bqd", attn, v)
    return transpose_output(out, num_heads) @ params["W_o"]


if __name__ == "__main__":
    key = jax.random.PRNGKey(0)
    B, S = 2, 8
    num_hiddens, num_heads = 32, 4
    query_size = key_size = value_size = num_hiddens

    ks = jax.random.split(key, 8)
    scale = 1.0 / math.sqrt(num_hiddens)
    params = {
        "W_q": scale * jax.random.normal(ks[0], (query_size, num_hiddens), jnp.float32),
        "W_k": scale * jax.random.normal(ks[1], (key_size, num_hiddens), jnp.float32),
        "W_v": scale * jax.random.normal(ks[2], (value_size, num_hiddens), jnp.float32),
        "W_o": scale * jax.random.normal(ks[3], (num_hiddens, num_hiddens), jnp.float32),
    }

    queries = jax.random.normal(ks[4], (B, S, query_size), jnp.float32)
    keys = jax.random.normal(ks[5], (B, S, key_size), jnp.float32)
    values = jax.random.normal(ks[6], (B, S, value_size), jnp.float32)
    valid_lens = jnp.array([3, 6], dtype=jnp.int32)  # (batch,)

    out = multi_head_attention(queries, keys, values, valid_lens, params, num_heads)
    out = jax.block_until_ready(out)

    ref = reference_mha(queries, keys, values, valid_lens, params, num_heads)
    assert out.shape == (B, S, num_hiddens)
    # bf16 MXU path vs f32 reference -> bf16-level tolerance
    assert jnp.allclose(out, ref, atol=5e-2, rtol=5e-2), "mismatch vs reference"

    print("KERNEL_OK")
</pallas_src>

<mosaic_0001>
module attributes {stable_mosaic.version = 11 : i64} {
  func.func @_matmul_resident_kernel(%arg0: i32, %arg1: memref<16x32xbf16, #tpu.memory_space<vmem>>, %arg2: memref<32x32xbf16, #tpu.memory_space<vmem>>, %arg3: memref<16x32xbf16, #tpu.memory_space<vmem>>) attributes {dimension_semantics = [#tpu.dimension_semantics<parallel>], iteration_bounds = array<i64: 1>, scalar_prefetch = 0 : i64, scratch_operands = 0 : i64, tpu.core_type = #tpu.core_type<tc>, window_params = [{transform_indices = @transform_0, window_bounds = array<i64: 16, 32>}, {pipeline_mode = #tpu.pipeline_mode<synchronous>, transform_indices = @transform_1, window_bounds = array<i64: 32, 32>}, {transform_indices = @transform_2, window_bounds = array<i64: 16, 32>}]} {
    %c0 = arith.constant 0 : index
    %c0_0 = arith.constant 0 : index
    %0 = vector.load %arg1[%c0, %c0_0] : memref<16x32xbf16, #tpu.memory_space<vmem>>, vector<16x32xbf16>
    %c0_1 = arith.constant 0 : index
    %c0_2 = arith.constant 0 : index
    %1 = vector.load %arg2[%c0_1, %c0_2] : memref<32x32xbf16, #tpu.memory_space<vmem>>, vector<32x32xbf16>
    %cst = arith.constant dense<0.000000e+00> : vector<16x32xf32>
    %2 = tpu.matmul %0, %1, %cst {dimension_numbers = #tpu.dot_dimension_numbers<[1], [0], [0], [1], [0, 0, 1, 1], [], []>} : vector<16x32xbf16>, vector<32x32xbf16>, vector<16x32xf32> -> vector<16x32xf32>
    %3 = arith.truncf %2 : vector<16x32xf32> to vector<16x32xbf16>
    %c0_3 = arith.constant 0 : index
    %c0_4 = arith.constant 0 : index
    %4 = vector.load %arg3[%c0_3, %c0_4] : memref<16x32xbf16, #tpu.memory_space<vmem>>, vector<16x32xbf16>
    tpu.vector_store %arg3[%c0_3, %c0_4], %3 {strides = array<i32>} : memref<16x32xbf16, #tpu.memory_space<vmem>>, vector<16x32xbf16>,
    return
  }
  func.func @transform_0(%arg0: i32) -> (i32, i32) {
    %c0_i32 = arith.constant 0 : i32
    %c0_i32_0 = arith.constant 0 : i32
    return %arg0, %c0_i32 : i32, i32
  }
  func.func @transform_1(%arg0: i32) -> (i32, i32) {
    %c0_i32 = arith.constant 0 : i32
    %c0_i32_0 = arith.constant 0 : i32
    %c0_i32_1 = arith.constant 0 : i32
    return %c0_i32, %c0_i32_0 : i32, i32
  }
  func.func @transform_2(%arg0: i32) -> (i32, i32) {
    %c0_i32 = arith.constant 0 : i32
    %c0_i32_0 = arith.constant 0 : i32
    return %arg0, %c0_i32 : i32, i32
  }
}

</mosaic_0001>

<llo_original>
// kernel: tpu_custom_call.1
$region0: #{tpu_custom_call.1}
  #allocation0 [shape = 'u32[]', space=smem, size = 0x4, offset = 0x4, fixed_abs, tag = 'smem constant byte address 0x4 - core index']
  #allocation1 [shape = 'u32[72,128]{1,0:T(1,128)}', space=vmem, size = 0x9000, scoped, tag = 'internal scratch']
  %s0 = inlined_call_operand.hbm [shape: bf16[16,32], index: 0, kind: input, shape index: {}]
  %s1 = inlined_call_operand.hbm [shape: bf16[32,32], index: 1, kind: input, shape index: {}]
  %s2 = inlined_call_operand.hbm [shape: bf16[16,32], index: 2, kind: output, shape index: {}]
  %s3 = sld [smem:[#allocation0]]
  $region26: #{tpu_custom_call.1} parent=0
    _
  %s5 = ssub.s32 1, %s3
  %s6 = scalar_select 0, %s5, %s3
  $region1: #{tpu_custom_call.1} parent=0
    #allocation2 [shape = 'u8[4096]{0}', space=vmem, size = 0x1000, scoped, tag = 'input window, operand 0, single buffered']
    #allocation3 [shape = 's32[1]{0}', space=sflag, size = 0x4, scoped, tag = 'scoped memory for tpu_custom_call.1']
    #allocation4 [shape = 's32[1]{0}', space=sflag, size = 0x4, scoped, tag = 'scoped memory for tpu_custom_call.1']
    #allocation5 [shape = 'u8[8192]{0}', space=vmem, size = 0x2000, scoped, tag = 'input window, operand 1, single buffered']
    #allocation6 [shape = 's32[1]{0}', space=sflag, size = 0x4, scoped, tag = 'scoped memory for tpu_custom_call.1']
    #allocation7 [shape = 'u8[4096]{0}', space=vmem, size = 0x1000, scoped, tag = 'output window, operand 0, single buffered']
    %7 = vsyncpa [#allocation3], 0
    %8 = vsyncpa [#allocation6], 0
    %9 = vsyncpa [#allocation4], 0
    // Predicated region
    $region2: #{tpu_custom_call.1} parent=1 // pred_check
      _
    $region3: #{tpu_custom_call.1} parent=1 // pred_check_branch
      %11 = sbr.rel (0) target = $region5
    $region4: #{tpu_custom_call.1} parent=1 // pred_region
      %13 = vsyncadd [#allocation3], 0
      %s14 = sshll.u32 %s0, 4
      %s15 = int_to_ptr.hbm [resolvable:$true] %s14
      %s16 = sshll.u32 [#allocation2], 4
      %s17 = int_to_ptr.vmem [resolvable:$true] %s16
      %22 = dma.hbm_to_vmem [thread:$0]  %s15, 128, %s17, [#allocation3], 64, 64, 4
    $region5: #{tpu_custom_call.1} parent=1 // pred_fallthru
      _
    // Predicated region
    $region6: #{tpu_custom_call.1} parent=1 // pred_check
      _
    $region7: #{tpu_custom_call.1} parent=1 // pred_check_branch
      %24 = sbr.rel (0) target = $region9
    $region8: #{tpu_custom_call.1} parent=1 // pred_region
      %26 = vsyncadd [#allocation6], 0
      %s27 = sshll.u32 %s1, 4
      %s28 = int_to_ptr.hbm [resolvable:$true] %s27
      %s29 = sshll.u32 [#allocation5], 4
      %s30 = int_to_ptr.vmem [resolvable:$true] %s29
      %35 = dma.hbm_to_vmem [thread:$0]  %s28, 256, %s30, [#allocation6], 64, 64, 4
    $region9: #{tpu_custom_call.1} parent=1 // pred_fallthru
      _
    // Predicated region
    $region10: #{tpu_custom_call.1} parent=1 // pred_check
      _
    $region11: #{tpu_custom_call.1} parent=1 // pred_check_branch
      %37 = sbr.rel (0) target = $region13
    $region12: #{tpu_custom_call.1} parent=1 // pred_region
      %39 = dma.done [#allocation3], 128
    $region13: #{tpu_custom_call.1} parent=1 // pred_fallthru
      _
    // Predicated region
    $region14: #{tpu_custom_call.1} parent=1 // pred_check
      _
    $region15: #{tpu_custom_call.1} parent=1 // pred_check_branch
      %41 = sbr.rel (0) target = $region17
    $region16: #{tpu_custom_call.1} parent=1 // pred_region
      %43 = dma.done [#allocation6], 256
    $region17: #{tpu_custom_call.1} parent=1 // pred_fallthru
      _
    %v45 = vld [vmem:[#allocation2] sm:$0xf]
    %v46 = vld [vmem:[#allocation2 + $0x4] sm:$0xf]
    %v47 = vld [vmem:[#allocation5] sm:$0xf]
    %v48 = vld [vmem:[#allocation5 + $0x4] sm:$0xf]
    %v49 = vld [vmem:[#allocation5 + $0x8] sm:$0xf]
    %v50 = vld [vmem:[#allocation5 + $0xc] sm:$0xf]
    %v53 = vunpack.c.l.b16 %v45
    %v54 = vunpack.c.l.b16 %v46
    %v55 = vpack.c.b16 %v54, %v53
    %v60 = vunpack.c.l.b16 %v47
    %v61 = vunpack.c.l.b16 %v48
    %v62 = vunpack.c.l.b16 %v49
    %v63 = vunpack.c.l.b16 %v50
    %v64 = vpack.c.b16 %v61, %v60
    %v65 = vpack.c.b16 %v63, %v62
    %vm68 = vcmask 261120
    %v70 = vsel %vm68, %v55, 0
    %72 = vmatpush.bf16.msra.mxu0 0
    %73 = vmatpush.bf16.msra.mxu0 0
    %74 = vmatpush.bf16.msra.mxu0 0
    %75 = vmatpush.bf16.msra.mxu0 0
    %76 = vmatpush.bf16.msra.mxu0 0
    %77 = vmatpush.bf16.msra.mxu0 0
    %78 = vmatpush.bf16.msra.mxu0 %v65
    %79 = vmatpush.bf16.msra.mxu0 %v64
    %80 = vmatmul.bf16.gmra.mxu0 %v70
    %v81 = vpop.f32.mrf.mxu0
    %v82 = vadd.f32 0.0, %v81
    %v83 = vpop.f32.mrf.mxu0
    %v84 = vadd.f32 0.0, %v83
    %85 = vdwg.mxu0
    %v86 = vpack.c.bf16 %v82, %v82
    %v87 = vpack.c.bf16 %v84, %v84
    %vm88 = vcmask 257024
    %89 = vst.msk [vmem:[#allocation7] sm:$0xf] %vm88, %v86
    %90 = vst.msk [vmem:[#allocation7 + $0x4] sm:$0xf] %vm88, %v87
    // Predicated region
    $region18: #{tpu_custom_call.1} parent=1 // pred_check
      _
    $region19: #{tpu_custom_call.1} parent=1 // pred_check_branch
      %92 = sbr.rel (0) target = $region21
    $region20: #{tpu_custom_call.1} parent=1 // pred_region
      %94 = vsyncadd [#allocation4], 0
      %s95 = sshll.u32 [#allocation7], 4
      %s96 = int_to_ptr.vmem [resolvable:$true] %s95
      %s97 = sshll.u32 %s2, 4
      %s98 = int_to_ptr.hbm [resolvable:$true] %s97
      %103 = dma.vmem_to_hbm [thread:$0]  %s96, 128, %s98, [#allocation4], 64, 64, 4
    $region21: #{tpu_custom_call.1} parent=1 // pred_fallthru
      _
    // Predicated region
    $region22: #{tpu_custom_call.1} parent=1 // pred_check
      _
    $region23: #{tpu_custom_call.1} parent=1 // pred_check_branch
      %105 = sbr.rel (0) target = $region25
    $region24: #{tpu_custom_call.1} parent=1 // pred_region
      %107 = dma.done [#allocation4], 128
    $region25: #{tpu_custom_call.1} parent=1 // pred_fallthru
      _
    %108 = vsyncpa [#allocation3], 1
    %109 = vsyncpa [#allocation6], 1
    %110 = vsyncpa [#allocation4], 1

</llo_original>
